<compile_context>
chip_gen: v7x
topology: tpu7x:2x2x1
jax: 0.10.0
libtpu: 0.0.40
codegen_flags: <defaults>
</compile_context>

<pallas_src>
import functools

import jax
import jax.numpy as jnp
from jax.experimental import pallas as pl
from jax.experimental.pallas import tpu as pltpu

DIM = 32            # dim (small for the example; module default is 128)
FUTURE_STEPS = 80   # hard-coded 80 in the reference gather
OUT_CH = 6          # hard-coded 6 in the reference gather
NUM_ENSEMBLE = 4
TOP_K = 2
F_OUT = FUTURE_STEPS * OUT_CH   # 480

# Token-tile size: sized so double-buffered in/out blocks + live temporaries
# stay well under the 32 MiB scoped-VMEM limit requested below (~10 MiB at
# TM=256 with F_OUT=480 f32 outputs), leaving headroom on v7x (64 MiB phys).
TM_MAX = 256


def _round_up(n, m):
    return ((n + m - 1) // m) * m


# ---------------------------------------------------------------------------
# Kernel: fused per-expert 2-layer MLPs + top-k weighted combine, one M tile.
# ---------------------------------------------------------------------------
def moe_expert_kernel(x_ref, w1_ref, b1_ref, w2_ref, b2_ref, wgt_ref,
                      all_ref, comb_ref):
    E, D, F = w2_ref.shape
    x = x_ref[...]                                            # (TM, D) bf16

    # First layer of all E experts fused into one MXU matmul (N = E*D lanes).
    h_all = jnp.dot(x, w1_ref[...], preferred_element_type=jnp.float32)
    h_all = jnp.maximum(h_all + b1_ref[...], 0.0).astype(jnp.bfloat16)

    wgt = wgt_ref[...]                                        # (TM, E) f32
    comb = jnp.zeros((x.shape[0], F), jnp.float32)
    for e in range(E):                                        # static unroll
        o_e = jnp.dot(h_all[:, e * D:(e + 1) * D], w2_ref[e],
                      preferred_element_type=jnp.float32) + b2_ref[e]
        all_ref[:, e * F:(e + 1) * F] = o_e                   # token-major
        comb = comb + wgt[:, e:e + 1] * o_e
    comb_ref[...] = comb


def run_experts(x_bf16, w1cat, b1cat, w2, b2, weights, *, tm):
    M_pad, D = x_bf16.shape
    E, _, F = w2.shape
    grid = (M_pad // tm,)
    return pl.pallas_call(
        moe_expert_kernel,
        grid=grid,
        in_specs=[
            pl.BlockSpec((tm, D), lambda m: (m, 0)),          # x tile (bf16)
            pl.BlockSpec((D, E * D), lambda m: (0, 0)),       # W1cat (resident)
            pl.BlockSpec((1, E * D), lambda m: (0, 0)),       # b1cat
            pl.BlockSpec((E, D, F), lambda m: (0, 0, 0)),     # W2 (resident)
            pl.BlockSpec((E, 1, F), lambda m: (0, 0, 0)),     # b2
            pl.BlockSpec((tm, E), lambda m: (m, 0)),          # combine weights
        ],
        out_specs=[
            pl.BlockSpec((tm, E * F), lambda m: (m, 0)),      # all experts
            pl.BlockSpec((tm, F), lambda m: (m, 0)),          # combined
        ],
        out_shape=(jax.ShapeDtypeStruct((M_pad, E * F), jnp.float32),
                   jax.ShapeDtypeStruct((M_pad, F), jnp.float32)),
        compiler_params=pltpu.CompilerParams(
            dimension_semantics=("parallel",),     # megacore sharding on v7x
            vmem_limit_bytes=32 * 1024 * 1024),
    )(x_bf16, w1cat, b1cat, w2, b2, weights)


# ---------------------------------------------------------------------------
# MoELayer.forward
# ---------------------------------------------------------------------------
@functools.partial(jax.jit, static_argnames=("A",))
def moe_forward(x, params, A):
    B, _, D = x.shape
    Am1 = A - 1
    x_in = x[:, 1:A]                                          # (B, A-1, D)
    M = B * Am1
    x_flat = x_in.reshape(M, D)

    E = params["wr"].shape[1]

    # Router (linear + softmax + top-k + mask) in plain JAX: N=E=4 lanes,
    # negligible FLOPs; a separate pallas_call was pure launch/DMA overhead.
    logits = x_flat @ params["wr"] + params["br"][0]          # (M, E)
    probs = jax.nn.softmax(logits, axis=-1)
    topk_p, topk_i = jax.lax.top_k(probs, TOP_K)
    weights = jnp.sum(
        jax.nn.one_hot(topk_i, E, dtype=jnp.float32) * topk_p[..., None],
        axis=1)                                               # (M, E)

    # Pad token dim to a multiple of the tile size (remainder handling).
    tm = min(TM_MAX, _round_up(M, 8))
    M_pad = _round_up(M, tm)
    pad = M_pad - M
    x_p = jnp.pad(x_flat, ((0, pad), (0, 0))).astype(jnp.bfloat16)
    w_p = jnp.pad(weights, ((0, pad), (0, 0)))

    # Fuse the E first-layer weights into one (D, E*D) matrix (MXU-friendly N).
    w1cat = (jnp.transpose(params["w1"], (1, 0, 2))
             .reshape(D, E * D).astype(jnp.bfloat16))
    b1cat = params["b1"].reshape(1, E * D)                    # f32
    w2 = params["w2"].astype(jnp.bfloat16)                    # (E, D, F_OUT)
    b2 = params["b2"]                                         # (E, 1, F_OUT)

    all_flat, comb = run_experts(x_p, w1cat, b1cat, w2, b2, w_p, tm=tm)

    output = comb[:M].reshape(B, Am1, FUTURE_STEPS, OUT_CH)
    probs_out = probs.reshape(B, Am1, E)
    # token-major (M, E*F) -> pure reshape, no transpose.
    all_expert_outputs = all_flat[:M].reshape(B, Am1, E, FUTURE_STEPS, OUT_CH)
    return output, probs_out, all_expert_outputs


# ---------------------------------------------------------------------------
# Deterministic parameter init (xavier_uniform weights, zero bias, matching
# PlanningModelParrallel._init_weights).
# ---------------------------------------------------------------------------
def xavier_uniform(key, shape):
    fan_in, fan_out = shape[-2], shape[-1]
    bound = (6.0 / (fan_in + fan_out)) ** 0.5
    return jax.random.uniform(key, shape, jnp.float32, -bound, bound)


def init_params(key, dim, num_ensemble):
    ks = jax.random.split(key, 3)
    w1 = jnp.stack([xavier_uniform(k, (dim, dim))
                    for k in jax.random.split(ks[0], num_ensemble)])
    w2 = jnp.stack([xavier_uniform(k, (dim, F_OUT))
                    for k in jax.random.split(ks[1], num_ensemble)])
    return {
        "wr": xavier_uniform(ks[2], (dim, num_ensemble)),
        "br": jnp.zeros((1, num_ensemble), jnp.float32),
        "w1": w1,
        "b1": jnp.zeros((num_ensemble, 1, dim), jnp.float32),
        "w2": w2,
        "b2": jnp.zeros((num_ensemble, 1, F_OUT), jnp.float32),
    }


# ---------------------------------------------------------------------------
# Pure-JAX f32 reference (mirrors the torch forward, incl. the topk gather).
# ---------------------------------------------------------------------------
def ref_forward(x, params, A):
    x_in = x[:, 1:A]
    B, Am1, D = x_in.shape
    E = params["wr"].shape[1]
    logits = x_in @ params["wr"] + params["br"][0]
    probs = jax.nn.softmax(logits, axis=-1)
    topk_probs, topk_idx = jax.lax.top_k(probs, TOP_K)

    h = jnp.maximum(
        jnp.einsum("bnd,edh->ebnh", x_in, params["w1"]) + params["b1"][:, None],
        0.0)
    out = jnp.einsum("ebnh,ehf->ebnf", h, params["w2"]) + params["b2"][:, None]
    all_exp = (out.reshape(E, B, Am1, FUTURE_STEPS, OUT_CH)
               .transpose(1, 2, 0, 3, 4))                     # (B, A-1, E, 80, 6)

    idx = jnp.broadcast_to(topk_idx[..., None, None],
                           (B, Am1, TOP_K, FUTURE_STEPS, OUT_CH))
    sel = jnp.take_along_axis(all_exp, idx, axis=2)
    weighted = topk_probs[..., None, None] * sel
    output = weighted.sum(axis=2)
    return output, probs, all_exp


if __name__ == "__main__":
    B, N, A = 2, 6, 5   # x: [B, N, D]; forward uses agents 1..A-1 (4 agents)
    key = jax.random.PRNGKey(0)
    kx, kp = jax.random.split(key)
    x = jax.random.normal(kx, (B, N, DIM), dtype=jnp.float32)
    params = init_params(kp, DIM, NUM_ENSEMBLE)

    out, probs, all_exp = moe_forward(x, params, A)
    jax.block_until_ready((out, probs, all_exp))

    # sanity-check against pure-JAX f32 reference (kernel matmuls are bf16
    # with f32 accumulation -> relaxed tolerance on the MLP outputs).
    ref_out, ref_probs, ref_all = ref_forward(x, params, A)
    assert out.shape == (B, A - 1, FUTURE_STEPS, OUT_CH)
    assert probs.shape == (B, A - 1, NUM_ENSEMBLE)
    assert all_exp.shape == (B, A - 1, NUM_ENSEMBLE, FUTURE_STEPS, OUT_CH)
    assert jnp.allclose(probs, ref_probs, atol=1e-5, rtol=1e-5)
    assert jnp.allclose(out, ref_out, atol=3e-2, rtol=3e-2)
    assert jnp.allclose(all_exp, ref_all, atol=3e-2, rtol=3e-2)

    print("KERNEL_OK")
</pallas_src>

<mosaic_0001>
module attributes {stable_mosaic.version = 11 : i64} {
  func.func @moe_expert_kernel(%arg0: i32, %arg1: memref<8x32xbf16, #tpu.memory_space<vmem>>, %arg2: memref<32x128xbf16, #tpu.memory_space<vmem>>, %arg3: memref<1x128xf32, #tpu.memory_space<vmem>>, %arg4: memref<4x32x480xbf16, #tpu.memory_space<vmem>>, %arg5: memref<4x1x480xf32, #tpu.memory_space<vmem>>, %arg6: memref<8x4xf32, #tpu.memory_space<vmem>>, %arg7: memref<8x1920xf32, #tpu.memory_space<vmem>>, %arg8: memref<8x480xf32, #tpu.memory_space<vmem>>) attributes {dimension_semantics = [#tpu.dimension_semantics<parallel>], iteration_bounds = array<i64: 1>, scalar_prefetch = 0 : i64, scratch_operands = 0 : i64, tpu.core_type = #tpu.core_type<tc>, window_params = [{transform_indices = @transform_0, window_bounds = array<i64: 8, 32>}, {pipeline_mode = #tpu.pipeline_mode<synchronous>, transform_indices = @transform_1, window_bounds = array<i64: 32, 128>}, {pipeline_mode = #tpu.pipeline_mode<synchronous>, transform_indices = @transform_2, window_bounds = array<i64: 1, 128>}, {pipeline_mode = #tpu.pipeline_mode<synchronous>, transform_indices = @transform_3, window_bounds = array<i64: 4, 32, 480>}, {pipeline_mode = #tpu.pipeline_mode<synchronous>, transform_indices = @transform_4, window_bounds = array<i64: 4, 1, 480>}, {transform_indices = @transform_5, window_bounds = array<i64: 8, 4>}, {transform_indices = @transform_6, window_bounds = array<i64: 8, 1920>}, {transform_indices = @transform_7, window_bounds = array<i64: 8, 480>}]} {
    %c0 = arith.constant 0 : index
    %c0_0 = arith.constant 0 : index
    %0 = vector.load %arg1[%c0, %c0_0] : memref<8x32xbf16, #tpu.memory_space<vmem>>, vector<8x32xbf16>
    %c0_1 = arith.constant 0 : index
    %c0_2 = arith.constant 0 : index
    %1 = vector.load %arg2[%c0_1, %c0_2] : memref<32x128xbf16, #tpu.memory_space<vmem>>, vector<32x128xbf16>
    %cst = arith.constant dense<0.000000e+00> : vector<8x128xf32>
    %2 = tpu.matmul %0, %1, %cst {dimension_numbers = #tpu.dot_dimension_numbers<[1], [0], [0], [1], [0, 0, 1, 1], [], []>} : vector<8x32xbf16>, vector<32x128xbf16>, vector<8x128xf32> -> vector<8x128xf32>
    %c0_3 = arith.constant 0 : index
    %c0_4 = arith.constant 0 : index
    %3 = vector.load %arg3[%c0_3, %c0_4] : memref<1x128xf32, #tpu.memory_space<vmem>>, vector<1x128xf32>
    %4 = vector.broadcast %3 : vector<1x128xf32> to vector<8x128xf32>
    %5 = arith.addf %2, %4 : vector<8x128xf32>
    %cst_5 = arith.constant 0.000000e+00 : f32
    %6 = vector.broadcast %cst_5 : f32 to vector<8x128xf32>
    %7 = arith.maximumf %5, %6 : vector<8x128xf32>
    %8 = arith.truncf %7 : vector<8x128xf32> to vector<8x128xbf16>
    %c0_6 = arith.constant 0 : index
    %c0_7 = arith.constant 0 : index
    %9 = vector.load %arg6[%c0_6, %c0_7] : memref<8x4xf32, #tpu.memory_space<vmem>>, vector<8x4xf32>
    %cst_8 = arith.constant 0.000000e+00 : f32
    %10 = vector.broadcast %cst_8 : f32 to vector<8x480xf32>
    %11 = vector.extract_strided_slice %8 {offsets = [0, 0], sizes = [8, 32], strides = [1, 1]} : vector<8x128xbf16> to vector<8x32xbf16>
    %c0_9 = arith.constant 0 : index
    %c0_10 = arith.constant 0 : index
    %c0_11 = arith.constant 0 : index
    %12 = vector.load %arg4[%c0_9, %c0_10, %c0_11] : memref<4x32x480xbf16, #tpu.memory_space<vmem>>, vector<1x32x480xbf16>
    %13 = vector.shape_cast %12 : vector<1x32x480xbf16> to vector<32x480xbf16>
    %cst_12 = arith.constant dense<0.000000e+00> : vector<8x480xf32>
    %14 = tpu.matmul %11, %13, %cst_12 {dimension_numbers = #tpu.dot_dimension_numbers<[1], [0], [0], [1], [0, 0, 1, 1], [], []>} : vector<8x32xbf16>, vector<32x480xbf16>, vector<8x480xf32> -> vector<8x480xf32>
    %c0_13 = arith.constant 0 : index
    %c0_14 = arith.constant 0 : index
    %c0_15 = arith.constant 0 : index
    %15 = vector.load %arg5[%c0_13, %c0_14, %c0_15] : memref<4x1x480xf32, #tpu.memory_space<vmem>>, vector<1x1x480xf32>
    %16 = vector.shape_cast %15 : vector<1x1x480xf32> to vector<1x480xf32>
    %17 = vector.broadcast %16 : vector<1x480xf32> to vector<8x480xf32>
    %18 = arith.addf %14, %17 : vector<8x480xf32>
    %c0_16 = arith.constant 0 : index
    %c0_17 = arith.constant 0 : index
    %19 = vector.load %arg7[%c0_16, %c0_17] : memref<8x1920xf32, #tpu.memory_space<vmem>>, vector<8x480xf32>
    tpu.vector_store %arg7[%c0_16, %c0_17], %18 {strides = array<i32>} : memref<8x1920xf32, #tpu.memory_space<vmem>>, vector<8x480xf32>,
    %20 = vector.extract_strided_slice %9 {offsets = [0, 0], sizes = [8, 1], strides = [1, 1]} : vector<8x4xf32> to vector<8x1xf32>
    %21 = vector.broadcast %20 : vector<8x1xf32> to vector<8x480xf32>
    %22 = arith.mulf %21, %18 : vector<8x480xf32>
    %23 = arith.addf %10, %22 : vector<8x480xf32>
    %24 = vector.extract_strided_slice %8 {offsets = [0, 32], sizes = [8, 32], strides = [1, 1]} : vector<8x128xbf16> to vector<8x32xbf16>
    %c1 = arith.constant 1 : index
    %c0_18 = arith.constant 0 : index
    %c0_19 = arith.constant 0 : index
    %25 = vector.load %arg4[%c1, %c0_18, %c0_19] : memref<4x32x480xbf16, #tpu.memory_space<vmem>>, vector<1x32x480xbf16>
    %26 = vector.shape_cast %25 : vector<1x32x480xbf16> to vector<32x480xbf16>
    %cst_20 = arith.constant dense<0.000000e+00> : vector<8x480xf32>
    %27 = tpu.matmul %24, %26, %cst_20 {dimension_numbers = #tpu.dot_dimension_numbers<[1], [0], [0], [1], [0, 0, 1, 1], [], []>} : vector<8x32xbf16>, vector<32x480xbf16>, vector<8x480xf32> -> vector<8x480xf32>
    %c1_21 = arith.constant 1 : index
    %c0_22 = arith.constant 0 : index
    %c0_23 = arith.constant 0 : index
    %28 = vector.load %arg5[%c1_21, %c0_22, %c0_23] : memref<4x1x480xf32, #tpu.memory_space<vmem>>, vector<1x1x480xf32>
    %29 = vector.shape_cast %28 : vector<1x1x480xf32> to vector<1x480xf32>
    %30 = vector.broadcast %29 : vector<1x480xf32> to vector<8x480xf32>
    %31 = arith.addf %27, %30 : vector<8x480xf32>
    %c0_24 = arith.constant 0 : index
    %c480 = arith.constant 480 : index
    %32 = vector.load %arg7[%c0_24, %c480] : memref<8x1920xf32, #tpu.memory_space<vmem>>, vector<8x480xf32>
    tpu.vector_store %arg7[%c0_24, %c480], %31 {strides = array<i32>} : memref<8x1920xf32, #tpu.memory_space<vmem>>, vector<8x480xf32>,
    %33 = vector.extract_strided_slice %9 {offsets = [0, 1], sizes = [8, 1], strides = [1, 1]} : vector<8x4xf32> to vector<8x1xf32>
    %34 = vector.broadcast %33 : vector<8x1xf32> to vector<8x480xf32>
    %35 = arith.mulf %34, %31 : vector<8x480xf32>
    %36 = arith.addf %23, %35 : vector<8x480xf32>
    %37 = vector.extract_strided_slice %8 {offsets = [0, 64], sizes = [8, 32], strides = [1, 1]} : vector<8x128xbf16> to vector<8x32xbf16>
    %c2 = arith.constant 2 : index
    %c0_25 = arith.constant 0 : index
    %c0_26 = arith.constant 0 : index
    %38 = vector.load %arg4[%c2, %c0_25, %c0_26] : memref<4x32x480xbf16, #tpu.memory_space<vmem>>, vector<1x32x480xbf16>
    %39 = vector.shape_cast %38 : vector<1x32x480xbf16> to vector<32x480xbf16>
    %cst_27 = arith.constant dense<0.000000e+00> : vector<8x480xf32>
    %40 = tpu.matmul %37, %39, %cst_27 {dimension_numbers = #tpu.dot_dimension_numbers<[1], [0], [0], [1], [0, 0, 1, 1], [], []>} : vector<8x32xbf16>, vector<32x480xbf16>, vector<8x480xf32> -> vector<8x480xf32>
    %c2_28 = arith.constant 2 : index
    %c0_29 = arith.constant 0 : index
    %c0_30 = arith.constant 0 : index
    %41 = vector.load %arg5[%c2_28, %c0_29, %c0_30] : memref<4x1x480xf32, #tpu.memory_space<vmem>>, vector<1x1x480xf32>
    %42 = vector.shape_cast %41 : vector<1x1x480xf32> to vector<1x480xf32>
    %43 = vector.broadcast %42 : vector<1x480xf32> to vector<8x480xf32>
    %44 = arith.addf %40, %43 : vector<8x480xf32>
    %c0_31 = arith.constant 0 : index
    %c960 = arith.constant 960 : index
    %45 = vector.load %arg7[%c0_31, %c960] : memref<8x1920xf32, #tpu.memory_space<vmem>>, vector<8x480xf32>
    tpu.vector_store %arg7[%c0_31, %c960], %44 {strides = array<i32>} : memref<8x1920xf32, #tpu.memory_space<vmem>>, vector<8x480xf32>,
    %46 = vector.extract_strided_slice %9 {offsets = [0, 2], sizes = [8, 1], strides = [1, 1]} : vector<8x4xf32> to vector<8x1xf32>
    %47 = vector.broadcast %46 : vector<8x1xf32> to vector<8x480xf32>
    %48 = arith.mulf %47, %44 : vector<8x480xf32>
    %49 = arith.addf %36, %48 : vector<8x480xf32>
    %50 = vector.extract_strided_slice %8 {offsets = [0, 96], sizes = [8, 32], strides = [1, 1]} : vector<8x128xbf16> to vector<8x32xbf16>
    %c3 = arith.constant 3 : index
    %c0_32 = arith.constant 0 : index
    %c0_33 = arith.constant 0 : index
    %51 = vector.load %arg4[%c3, %c0_32, %c0_33] : memref<4x32x480xbf16, #tpu.memory_space<vmem>>, vector<1x32x480xbf16>
    %52 = vector.shape_cast %51 : vector<1x32x480xbf16> to vector<32x480xbf16>
    %cst_34 = arith.constant dense<0.000000e+00> : vector<8x480xf32>
    %53 = tpu.matmul %50, %52, %cst_34 {dimension_numbers = #tpu.dot_dimension_numbers<[1], [0], [0], [1], [0, 0, 1, 1], [], []>} : vector<8x32xbf16>, vector<32x480xbf16>, vector<8x480xf32> -> vector<8x480xf32>
    %c3_35 = arith.constant 3 : index
    %c0_36 = arith.constant 0 : index
    %c0_37 = arith.constant 0 : index
    %54 = vector.load %arg5[%c3_35, %c0_36, %c0_37] : memref<4x1x480xf32, #tpu.memory_space<vmem>>, vector<1x1x480xf32>
    %55 = vector.shape_cast %54 : vector<1x1x480xf32> to vector<1x480xf32>
    %56 = vector.broadcast %55 : vector<1x480xf32> to vector<8x480xf32>
    %57 = arith.addf %53, %56 : vector<8x480xf32>
    %c0_38 = arith.constant 0 : index
    %c1440 = arith.constant 1440 : index
    %58 = vector.load %arg7[%c0_38, %c1440] : memref<8x1920xf32, #tpu.memory_space<vmem>>, vector<8x480xf32>
    tpu.vector_store %arg7[%c0_38, %c1440], %57 {strides = array<i32>} : memref<8x1920xf32, #tpu.memory_space<vmem>>, vector<8x480xf32>,
    %59 = vector.extract_strided_slice %9 {offsets = [0, 3], sizes = [8, 1], strides = [1, 1]} : vector<8x4xf32> to vector<8x1xf32>
    %60 = vector.broadcast %59 : vector<8x1xf32> to vector<8x480xf32>
    %61 = arith.mulf %60, %57 : vector<8x480xf32>
    %62 = arith.addf %49, %61 : vector<8x480xf32>
    %c0_39 = arith.constant 0 : index
    %c0_40 = arith.constant 0 : index
    %63 = vector.load %arg8[%c0_39, %c0_40] : memref<8x480xf32, #tpu.memory_space<vmem>>, vector<8x480xf32>
    tpu.vector_store %arg8[%c0_39, %c0_40], %62 {strides = array<i32>} : memref<8x480xf32, #tpu.memory_space<vmem>>, vector<8x480xf32>,
    return
  }
  func.func @transform_0(%arg0: i32) -> (i32, i32) {
    %c0_i32 = arith.constant 0 : i32
    %c0_i32_0 = arith.constant 0 : i32
    return %arg0, %c0_i32 : i32, i32
  }
  func.func @transform_1(%arg0: i32) -> (i32, i32) {
    %c0_i32 = arith.constant 0 : i32
    %c0_i32_0 = arith.constant 0 : i32
    %c0_i32_1 = arith.constant 0 : i32
    return %c0_i32, %c0_i32_0 : i32, i32
  }
  func.func @transform_2(%arg0: i32) -> (i32, i32) {
    %c0_i32 = arith.constant 0 : i32
    %c0_i32_0 = arith.constant 0 : i32
    %c0_i32_1 = arith.constant 0 : i32
    return %c0_i32, %c0_i32_0 : i32, i32
  }
  func.func @transform_3(%arg0: i32) -> (i32, i32, i32) {
    %c0_i32 = arith.constant 0 : i32
    %c0_i32_0 = arith.constant 0 : i32
    %c0_i32_1 = arith.constant 0 : i32
    %c0_i32_2 = arith.constant 0 : i32
    return %c0_i32, %c0_i32_0, %c0_i32_1 : i32, i32, i32
  }
  func.func @transform_4(%arg0: i32) -> (i32, i32, i32) {
    %c0_i32 = arith.constant 0 : i32
    %c0_i32_0 = arith.constant 0 : i32
    %c0_i32_1 = arith.constant 0 : i32
    %c0_i32_2 = arith.constant 0 : i32
    return %c0_i32, %c0_i32_0, %c0_i32_1 : i32, i32, i32
  }
  func.func @transform_5(%arg0: i32) -> (i32, i32) {
    %c0_i32 = arith.constant 0 : i32
    %c0_i32_0 = arith.constant 0 : i32
    return %arg0, %c0_i32 : i32, i32
  }
  func.func @transform_6(%arg0: i32) -> (i32, i32) {
    %c0_i32 = arith.constant 0 : i32
    %c0_i32_0 = arith.constant 0 : i32
    return %arg0, %c0_i32 : i32, i32
  }
  func.func @transform_7(%arg0: i32) -> (i32, i32) {
    %c0_i32 = arith.constant 0 : i32
    %c0_i32_0 = arith.constant 0 : i32
    return %arg0, %c0_i32 : i32, i32
  }
}

</mosaic_0001>

<llo_original>
// kernel: moe_forward.1
$region0: #{moe_forward.1}
  #allocation0 [shape = 'u32[]', space=smem, size = 0x4, offset = 0x4, fixed_abs, tag = 'smem constant byte address 0x4 - core index']
  #allocation1 [shape = 'u32[144,128]{1,0:T(1,128)}', space=vmem, size = 0x12000, scoped, tag = 'internal scratch']
  %s0 = inlined_call_operand.vmem [shape: bf16[8,32], index: 0, kind: input, shape index: {}]
  %s1 = inlined_call_operand.vmem [shape: bf16[32,128], index: 1, kind: input, shape index: {}]
  %s2 = inlined_call_operand.vmem [shape: f32[1,128], index: 2, kind: input, shape index: {}]
  %s3 = inlined_call_operand.vmem [shape: bf16[4,32,480], index: 3, kind: input, shape index: {}]
  %s4 = inlined_call_operand.hbm [shape: f32[4,1,480], index: 4, kind: input, shape index: {}]
  %s5 = inlined_call_operand.vmem [shape: f32[8,4], index: 5, kind: input, shape index: {}]
  %s6 = inlined_call_operand.vmem [shape: f32[8,1920], index: 6, kind: output, shape index: {0}]
  %s7 = inlined_call_operand.vmem [shape: f32[8,480], index: 7, kind: output, shape index: {1}]
  %8 = xla_tuple %s6, %s7
  %s9 = sld [smem:[#allocation0]]
  $region46: #{moe_forward.1} parent=0
    _
  %s11 = ssub.s32 1, %s9
  %s12 = scalar_select 0, %s11, %s9
  $region1: #{moe_forward.1} parent=0
    #allocation2 [shape = 'u8[8192]{0}', space=vmem, size = 0x2000, scoped, tag = 'input window, operand 4, single buffered']
    #allocation3 [shape = 's32[1]{0}', space=sflag, size = 0x4, scoped, tag = 'scoped memory for moe_forward.1']
    %13 = vsyncpa [#allocation3], 0
    // Predicated region
    $region2: #{moe_forward.1} parent=1 // pred_check
      _
    $region3: #{moe_forward.1} parent=1 // pred_check_branch
      %15 = sbr.rel (0) target = $region5
    $region4: #{moe_forward.1} parent=1 // pred_region
      _
    $region5: #{moe_forward.1} parent=1 // pred_fallthru
      _
    // Predicated region
    $region6: #{moe_forward.1} parent=1 // pred_check
      _
    $region7: #{moe_forward.1} parent=1 // pred_check_branch
      %17 = sbr.rel (0) target = $region9
    $region8: #{moe_forward.1} parent=1 // pred_region
      _
    $region9: #{moe_forward.1} parent=1 // pred_fallthru
      _
    // Predicated region
    $region10: #{moe_forward.1} parent=1 // pred_check
      _
    $region11: #{moe_forward.1} parent=1 // pred_check_branch
      %19 = sbr.rel (0) target = $region13
    $region12: #{moe_forward.1} parent=1 // pred_region
      _
    $region13: #{moe_forward.1} parent=1 // pred_fallthru
      _
    // Predicated region
    $region14: #{moe_forward.1} parent=1 // pred_check
      _
    $region15: #{moe_forward.1} parent=1 // pred_check_branch
      %21 = sbr.rel (0) target = $region17
    $region16: #{moe_forward.1} parent=1 // pred_region
      _
    $region17: #{moe_forward.1} parent=1 // pred_fallthru
      _
    // Predicated region
    $region18: #{moe_forward.1} parent=1 // pred_check
      _
    $region19: #{moe_forward.1} parent=1 // pred_check_branch
      %23 = sbr.rel (0) target = $region21
    $region20: #{moe_forward.1} parent=1 // pred_region
      %s25 = ssub.s32 256, 256
      %26 = vsyncadd [#allocation3], %s25
      %s27 = sshll.u32 [#allocation2], 4
      %s28 = int_to_ptr.vmem [resolvable:$true] %s27
      %33 = dma.hbm_to_vmem [thread:$0]  %s4, 256, %s28, [#allocation3], 64, 64, 4
    $region21: #{moe_forward.1} parent=1 // pred_fallthru
      _
    // Predicated region
    $region22: #{moe_forward.1} parent=1 // pred_check
      _
    $region23: #{moe_forward.1} parent=1 // pred_check_branch
      %35 = sbr.rel (0) target = $region25
    $region24: #{moe_forward.1} parent=1 // pred_region
      _
    $region25: #{moe_forward.1} parent=1 // pred_fallthru
      _
    // Predicated region
    $region26: #{moe_forward.1} parent=1 // pred_check
      _
    $region27: #{moe_forward.1} parent=1 // pred_check_branch
      %37 = sbr.rel (0) target = $region29
    $region28: #{moe_forward.1} parent=1 // pred_region
      %38 = dma.done [#allocation3], 256
    $region29: #{moe_forward.1} parent=1 // pred_fallthru
      _
    %v40 = vld [vmem:[%s0] sm:$0xf]
    %v41 = vld [vmem:[%s1] sm:$0xf]
    %v42 = vld [vmem:[%s1 + $0x4] sm:$0xf]
    %v43 = vld [vmem:[%s1 + $0x8] sm:$0xf]
    %v44 = vld [vmem:[%s1 + $0xc] sm:$0xf]
    %v45 = vld [vmem:[%s2] sm:$0x1]
    %v47 = vlaneseq
    %v48 = vshrl.u32 %v47, 7
    %v49 = vsub.s32 0, %v48
    %v50 = vrot.slane %v45, %v49
    %v56 = vunpack.c.l.b16 %v41
    %v57 = vunpack.c.l.b16 %v42
    %v58 = vunpack.c.l.b16 %v43
    %v59 = vunpack.c.l.b16 %v44
    %v60 = vpack.c.b16 %v57, %v56
    %v61 = vpack.c.b16 %v59, %v58
    %vm64 = vcmask 261120
    %v66 = vsel %vm64, %v40, 0
    %68 = vmatprep.subr.bf16.mxu0 0
    %69 = vmatpush1.bf16.msra.mxu0 %v60
    %70 = vmatprep.subr.bf16.mxu0 0
    %71 = vmatpush1.bf16.msra.mxu0 %v61
    %72 = vmatprep.subr.bf16.mxu0 0
    %73 = vmatpush1.bf16.msra.mxu0 0
    %74 = vmatprep.subr.bf16.mxu0 0
    %75 = vmatpush1.bf16.msra.mxu0 0
    %76 = vmatprep.subr.bf16.mxu0 0
    %77 = vmatpush1.bf16.msra.mxu0 0
    %78 = vmatprep.subr.bf16.mxu0 0
    %79 = vmatpush1.bf16.msra.mxu0 0
    %80 = vmatprep.subr.bf16.mxu0 0
    %81 = vmatpush1.bf16.msra.mxu0 0
    %82 = vmatprep.subr.bf16.mxu0 0
    %83 = vmatpush1.bf16.msra.mxu0 0
    %84 = vmatprep.subr.bf16.mxu0 0
    %85 = vmatpush1.bf16.msra.mxu0 0
    %86 = vmatprep.subr.bf16.mxu0 0
    %87 = vmatpush1.bf16.msra.mxu0 0
    %88 = vmatprep.subr.bf16.mxu0 0
    %89 = vmatpush1.bf16.msra.mxu0 0
    %90 = vmatprep.subr.bf16.mxu0 0
    %91 = vmatpush1.bf16.msra.mxu0 0
    %92 = vmatprep.subr.bf16.mxu0 0
    %93 = vmatpush1.bf16.msra.mxu0 0
    %94 = vmatprep.subr.bf16.mxu0 0
    %95 = vmatpush1.bf16.msra.mxu0 0
    %96 = vmatprep.subr.bf16.mxu0 0
    %97 = vmatpush1.bf16.msra.mxu0 0
    %98 = vmatprep.subr.bf16.mxu0 0
    %99 = vmatpush1.bf16.msra.mxu0 0
    %100 = vmatprep.mubr.bf16.mxu0 0
    %101 = vmatmul.mubr.bf16.gmra.mrb[0].mxu0 %v66
    %v102 = vpop.f32.mrb[0].mxu0
    %v103 = vadd.f32 %v50, %v102
    %v104 = vpop.f32.mrb[0].mxu0
    %v105 = vpop.f32.mrb[0].mxu0
    %v106 = vpop.f32.mrb[0].mxu0
    %107 = vdwg.mxu0
    %v108 = vmax.f32 %v103, 0.0
    %v109 = vpack.c.bf16 %v108, %v108
    %v110 = vld [vmem:[%s5] sm:$0xff]
    %v111 = vld [vmem:[%s3] sm:$0xff]
    %v112 = vld [vmem:[%s3 + $0x8] sm:$0xff]
    %v113 = vld [vmem:[%s3 + $0x10] sm:$0xff]
    %v114 = vld [vmem:[%s3 + $0x18] sm:$0xff]
    %v115 = vld [vmem:[%s3 + $0x20] sm:$0xff]
    %v116 = vld [vmem:[%s3 + $0x28] sm:$0xff]
    %v117 = vld [vmem:[%s3 + $0x30] sm:$0xff]
    %v118 = vld [vmem:[%s3 + $0x38] sm:$0xff]
    %v119 = vld [vmem:[#allocation2] sm:$0xf]
    %v121 = vlaneseq
    %v122 = vshrl.u32 %v121, 7
    %v123 = vsub.s32 0, %v122
    %v124 = vrot.slane %v119, %v123
    %v125 = vlaneseq
    %v126 = vshrl.u32 %v125, 7
    %v127 = vsub.s32 1, %v126
    %v128 = vrot.slane %v119, %v127
    %v129 = vlaneseq
    %v130 = vshrl.u32 %v129, 7
    %v131 = vsub.s32 2, %v130
    %v132 = vrot.slane %v119, %v131
    %v133 = vlaneseq
    %v134 = vshrl.u32 %v133, 7
    %v135 = vsub.s32 3, %v134
    %v136 = vrot.slane %v119, %v135
    %v149 = vunpack.c.l.b16 %v111
    %v150 = vunpack.c.h.b16 %v111
    %v151 = vunpack.c.l.b16 %v112
    %v152 = vunpack.c.h.b16 %v112
    %v153 = vunpack.c.l.b16 %v113
    %v154 = vunpack.c.h.b16 %v113
    %v155 = vunpack.c.l.b16 %v114
    %v156 = vunpack.c.h.b16 %v114
    %v157 = vunpack.c.l.b16 %v115
    %v158 = vunpack.c.h.b16 %v115
    %v159 = vunpack.c.l.b16 %v116
    %v160 = vunpack.c.h.b16 %v116
    %v161 = vunpack.c.l.b16 %v117
    %v162 = vunpack.c.h.b16 %v117
    %v163 = vunpack.c.l.b16 %v118
    %v164 = vunpack.c.h.b16 %v118
    %v165 = vpack.c.b16 %v153, %v149
    %v166 = vpack.c.b16 %v154, %v150
    %v167 = vpack.c.b16 %v155, %v151
    %v168 = vpack.c.b16 %v156, %v152
    %v169 = vpack.c.b16 %v161, %v157
    %v170 = vpack.c.b16 %v162, %v158
    %v171 = vpack.c.b16 %v163, %v159
    %v172 = vpack.c.b16 %v164, %v160
    %v182 = vsel %vm64, %v109, 0
    %184 = vmatprep.subr.bf16.mxu0 %v166
    %185 = vmatpush1.bf16.msra.mxu0 %v165
    %186 = vmatprep.subr.bf16.mxu0 %v170
    %187 = vmatpush1.bf16.msra.mxu0 %v169
    %188 = vmatprep.subr.bf16.mxu0 0
    %189 = vmatpush1.bf16.msra.mxu0 0
    %190 = vmatprep.subr.bf16.mxu0 0
    %191 = vmatpush1.bf16.msra.mxu0 0
    %192 = vmatprep.subr.bf16.mxu0 0
    %193 = vmatpush1.bf16.msra.mxu0 0
    %194 = vmatprep.subr.bf16.mxu0 0
    %195 = vmatpush1.bf16.msra.mxu0 0
    %196 = vmatprep.subr.bf16.mxu0 0
    %197 = vmatpush1.bf16.msra.mxu0 0
    %198 = vmatprep.subr.bf16.mxu0 0
    %199 = vmatpush1.bf16.msra.mxu0 0
    %200 = vmatprep.subr.bf16.mxu0 0
    %201 = vmatpush1.bf16.msra.mxu0 0
    %202 = vmatprep.subr.bf16.mxu0 0
    %203 = vmatpush1.bf16.msra.mxu0 0
    %204 = vmatprep.subr.bf16.mxu0 0
    %205 = vmatpush1.bf16.msra.mxu0 0
    %206 = vmatprep.subr.bf16.mxu0 0
    %207 = vmatpush1.bf16.msra.mxu0 0
    %208 = vmatprep.subr.bf16.mxu0 0
    %209 = vmatpush1.bf16.msra.mxu0 0
    %210 = vmatprep.subr.bf16.mxu0 0
    %211 = vmatpush1.bf16.msra.mxu0 0
    %212 = vmatprep.subr.bf16.mxu0 0
    %213 = vmatpush1.bf16.msra.mxu0 0
    %214 = vmatprep.subr.bf16.mxu0 0
    %215 = vmatpush1.bf16.msra.mxu0 0
    %216 = vmatprep.mubr.bf16.mxu0 0
    %217 = vmatmul.mubr.bf16.gmra.mrb[0].mxu0 %v182
    %v218 = vpop.f32.mrb[0].mxu0
    %v219 = vadd.f32 %v124, %v218
    %v220 = vpop.f32.mrb[0].mxu0
    %v221 = vadd.f32 %v128, %v220
    %v222 = vpop.f32.mrb[0].mxu0
    %v223 = vpop.f32.mrb[0].mxu0
    %224 = vdwg.mxu0
    %225 = vmatprep.subr.bf16.mxu0 %v168
    %226 = vmatpush1.bf16.msra.mxu0 %v167
    %227 = vmatprep.subr.bf16.mxu0 %v172
    %228 = vmatpush1.bf16.msra.mxu0 %v171
    %229 = vmatprep.subr.bf16.mxu0 0
    %230 = vmatpush1.bf16.msra.mxu0 0
    %231 = vmatprep.subr.bf16.mxu0 0
    %232 = vmatpush1.bf16.msra.mxu0 0
    %233 = vmatprep.subr.bf16.mxu0 0
    %234 = vmatpush1.bf16.msra.mxu0 0
    %235 = vmatprep.subr.bf16.mxu0 0
    %236 = vmatpush1.bf16.msra.mxu0 0
    %237 = vmatprep.subr.bf16.mxu0 0
    %238 = vmatpush1.bf16.msra.mxu0 0
    %239 = vmatprep.subr.bf16.mxu0 0
    %240 = vmatpush1.bf16.msra.mxu0 0
    %241 = vmatprep.subr.bf16.mxu0 0
    %242 = vmatpush1.bf16.msra.mxu0 0
    %243 = vmatprep.subr.bf16.mxu0 0
    %244 = vmatpush1.bf16.msra.mxu0 0
    %245 = vmatprep.subr.bf16.mxu0 0
    %246 = vmatpush1.bf16.msra.mxu0 0
    %247 = vmatprep.subr.bf16.mxu0 0
    %248 = vmatpush1.bf16.msra.mxu0 0
    %249 = vmatprep.subr.bf16.mxu0 0
    %250 = vmatpush1.bf16.msra.mxu0 0
    %251 = vmatprep.subr.bf16.mxu0 0
    %252 = vmatpush1.bf16.msra.mxu0 0
    %253 = vmatprep.subr.bf16.mxu0 0
    %254 = vmatpush1.bf16.msra.mxu0 0
    %255 = vmatprep.subr.bf16.mxu0 0
    %256 = vmatpush1.bf16.msra.mxu0 0
    %257 = vmatprep.mubr.bf16.mxu0 0
    %258 = vmatmul.mubr.bf16.gmra.mrb[0].mxu0 %v182
    %v259 = vpop.f32.mrb[0].mxu0
    %v260 = vadd.f32 %v132, %v259
    %v261 = vpop.f32.mrb[0].mxu0
    %v262 = vadd.f32 %v136, %v261
    %v263 = vpop.f32.mrb[0].mxu0
    %v264 = vpop.f32.mrb[0].mxu0
    %265 = vdwg.mxu0
    %266 = vst [vmem:[%s6] sm:$0xff] %v219
    %267 = vst [vmem:[%s6 + $0x8] sm:$0xff] %v221
    %268 = vst [vmem:[%s6 + $0x10] sm:$0xff] %v260
    %vm269 = vcmask 785408
    %270 = vst.msk [vmem:[%s6 + $0x18] sm:$0xff] %vm269, %v262
    %272 = vset.pattern.permute.xlu0 0
    %273 = vperm.xlu0 %272, %v110
    %v274 = vpop.permute.xlu0 %273
    %v276 = vmul.f32 %v274, %v219
    %v277 = vmul.f32 %v274, %v221
    %v278 = vmul.f32 %v274, %v260
    %v279 = vmul.f32 %v274, %v262
    %v280 = vadd.f32 %v276, 0.0
    %v281 = vadd.f32 %v277, 0.0
    %v282 = vadd.f32 %v278, 0.0
    %v283 = vadd.f32 %v279, 0.0
    %s284 = scalar_lea.vmem %s3, 64
    %v285 = vld [vmem:[%s284] sm:$0xff]
    %v286 = vld [vmem:[%s284 + $0x8] sm:$0xff]
    %v287 = vld [vmem:[%s284 + $0x10] sm:$0xff]
    %v288 = vld [vmem:[%s284 + $0x18] sm:$0xff]
    %v289 = vld [vmem:[%s284 + $0x20] sm:$0xff]
    %v290 = vld [vmem:[%s284 + $0x28] sm:$0xff]
    %v291 = vld [vmem:[%s284 + $0x30] sm:$0xff]
    %v292 = vld [vmem:[%s284 + $0x38] sm:$0xff]
    %s293 = scalar_lea.vmem [#allocation2], 4
    %v294 = vld [vmem:[%s293] sm:$0xf]
    %v296 = vlaneseq
    %v297 = vshrl.u32 %v296, 7
    %v298 = vsub.s32 0, %v297
    %v299 = vrot.slane %v294, %v298
    %v300 = vlaneseq
    %v301 = vshrl.u32 %v300, 7
    %v302 = vsub.s32 1, %v301
    %v303 = vrot.slane %v294, %v302
    %v304 = vlaneseq
    %v305 = vshrl.u32 %v304, 7
    %v306 = vsub.s32 2, %v305
    %v307 = vrot.slane %v294, %v306
    %v308 = vlaneseq
    %v309 = vshrl.u32 %v308, 7
    %v310 = vsub.s32 3, %v309
    %v311 = vrot.slane %v294, %v310
    %317 = vrot.lane.b32.xlu0 %v109, 96
    %v318 = vpop.permute.xlu0 %317
    %v327 = vunpack.c.l.b16 %v285
    %v328 = vunpack.c.h.b16 %v285
    %v329 = vunpack.c.l.b16 %v286
    %v330 = vunpack.c.h.b16 %v286
    %v331 = vunpack.c.l.b16 %v287
    %v332 = vunpack.c.h.b16 %v287
    %v333 = vunpack.c.l.b16 %v288
    %v334 = vunpack.c.h.b16 %v288
    %v335 = vunpack.c.l.b16 %v289
    %v336 = vunpack.c.h.b16 %v289
    %v337 = vunpack.c.l.b16 %v290
    %v338 = vunpack.c.h.b16 %v290
    %v339 = vunpack.c.l.b16 %v291
    %v340 = vunpack.c.h.b16 %v291
    %v341 = vunpack.c.l.b16 %v292
    %v342 = vunpack.c.h.b16 %v292
    %v343 = vpack.c.b16 %v331, %v327
    %v344 = vpack.c.b16 %v332, %v328
    %v345 = vpack.c.b16 %v333, %v329
    %v346 = vpack.c.b16 %v334, %v330
    %v347 = vpack.c.b16 %v339, %v335
    %v348 = vpack.c.b16 %v340, %v336
    %v349 = vpack.c.b16 %v341, %v337
    %v350 = vpack.c.b16 %v342, %v338
    %v360 = vsel %vm64, %v318, 0
    %362 = vmatprep.subr.bf16.mxu0 %v344
    %363 = vmatpush1.bf16.msra.mxu0 %v343
    %364 = vmatprep.subr.bf16.mxu0 %v348
    %365 = vmatpush1.bf16.msra.mxu0 %v347
    %366 = vmatprep.subr.bf16.mxu0 0
    %367 = vmatpush1.bf16.msra.mxu0 0
    %368 = vmatprep.subr.bf16.mxu0 0
    %369 = vmatpush1.bf16.msra.mxu0 0
    %370 = vmatprep.subr.bf16.mxu0 0
    %371 = vmatpush1.bf16.msra.mxu0 0
    %372 = vmatprep.subr.bf16.mxu0 0
    %373 = vmatpush1.bf16.msra.mxu0 0
    %374 = vmatprep.subr.bf16.mxu0 0
    %375 = vmatpush1.bf16.msra.mxu0 0
    %376 = vmatprep.subr.bf16.mxu0 0
    %377 = vmatpush1.bf16.msra.mxu0 0
    %378 = vmatprep.subr.bf16.mxu0 0
    %379 = vmatpush1.bf16.msra.mxu0 0
    %380 = vmatprep.subr.bf16.mxu0 0
    %381 = vmatpush1.bf16.msra.mxu0 0
    %382 = vmatprep.subr.bf16.mxu0 0
    %383 = vmatpush1.bf16.msra.mxu0 0
    %384 = vmatprep.subr.bf16.mxu0 0
    %385 = vmatpush1.bf16.msra.mxu0 0
    %386 = vmatprep.subr.bf16.mxu0 0
    %387 = vmatpush1.bf16.msra.mxu0 0
    %388 = vmatprep.subr.bf16.mxu0 0
    %389 = vmatpush1.bf16.msra.mxu0 0
    %390 = vmatprep.subr.bf16.mxu0 0
    %391 = vmatpush1.bf16.msra.mxu0 0
    %392 = vmatprep.subr.bf16.mxu0 0
    %393 = vmatpush1.bf16.msra.mxu0 0
    %394 = vmatprep.mubr.bf16.mxu0 0
    %395 = vmatmul.mubr.bf16.gmra.mrb[0].mxu0 %v360
    %v396 = vpop.f32.mrb[0].mxu0
    %v397 = vadd.f32 %v299, %v396
    %v398 = vpop.f32.mrb[0].mxu0
    %v399 = vadd.f32 %v303, %v398
    %v400 = vpop.f32.mrb[0].mxu0
    %v401 = vpop.f32.mrb[0].mxu0
    %402 = vdwg.mxu0
    %403 = vmatprep.subr.bf16.mxu0 %v346
    %404 = vmatpush1.bf16.msra.mxu0 %v345
    %405 = vmatprep.subr.bf16.mxu0 %v350
    %406 = vmatpush1.bf16.msra.mxu0 %v349
    %407 = vmatprep.subr.bf16.mxu0 0
    %408 = vmatpush1.bf16.msra.mxu0 0
    %409 = vmatprep.subr.bf16.mxu0 0
    %410 = vmatpush1.bf16.msra.mxu0 0
    %411 = vmatprep.subr.bf16.mxu0 0
    %412 = vmatpush1.bf16.msra.mxu0 0
    %413 = vmatprep.subr.bf16.mxu0 0
    %414 = vmatpush1.bf16.msra.mxu0 0
    %415 = vmatprep.subr.bf16.mxu0 0
    %416 = vmatpush1.bf16.msra.mxu0 0
    %417 = vmatprep.subr.bf16.mxu0 0
    %418 = vmatpush1.bf16.msra.mxu0 0
    %419 = vmatprep.subr.bf16.mxu0 0
    %420 = vmatpush1.bf16.msra.mxu0 0
    %421 = vmatprep.subr.bf16.mxu0 0
    %422 = vmatpush1.bf16.msra.mxu0 0
    %423 = vmatprep.subr.bf16.mxu0 0
    %424 = vmatpush1.bf16.msra.mxu0 0
    %425 = vmatprep.subr.bf16.mxu0 0
    %426 = vmatpush1.bf16.msra.mxu0 0
    %427 = vmatprep.subr.bf16.mxu0 0
    %428 = vmatpush1.bf16.msra.mxu0 0
    %429 = vmatprep.subr.bf16.mxu0 0
    %430 = vmatpush1.bf16.msra.mxu0 0
    %431 = vmatprep.subr.bf16.mxu0 0
    %432 = vmatpush1.bf16.msra.mxu0 0
    %433 = vmatprep.subr.bf16.mxu0 0
    %434 = vmatpush1.bf16.msra.mxu0 0
    %435 = vmatprep.mubr.bf16.mxu0 0
    %436 = vmatmul.mubr.bf16.gmra.mrb[0].mxu0 %v360
    %v437 = vpop.f32.mrb[0].mxu0
    %v438 = vadd.f32 %v307, %v437
    %v439 = vpop.f32.mrb[0].mxu0
    %v440 = vadd.f32 %v311, %v439
    %v441 = vpop.f32.mrb[0].mxu0
    %v442 = vpop.f32.mrb[0].mxu0
    %443 = vdwg.mxu0
    %448 = vrot.lane.b32.xlu0 %v397, 96
    %v449 = vpop.permute.xlu0 %448
    %450 = vrot.lane.b32.xlu0 %v399, 96
    %v451 = vpop.permute.xlu0 %450
    %452 = vrot.lane.b32.xlu0 %v438, 96
    %v453 = vpop.permute.xlu0 %452
    %454 = vrot.lane.b32.xlu0 %v440, 96
    %v455 = vpop.permute.xlu0 %454
    %v456 = vsel %vm269, %v449, %v451
    %v457 = vsel %vm269, %v451, %v453
    %v458 = vsel %vm269, %v453, %v455
    %vm464 = vcmask 1048320
    %465 = vst.msk [vmem:[%s6 + $0x18] sm:$0xff] %vm464, %v449
    %466 = vst [vmem:[%s6 + $0x20] sm:$0xff] %v456
    %467 = vst [vmem:[%s6 + $0x28] sm:$0xff] %v457
    %468 = vst [vmem:[%s6 + $0x30] sm:$0xff] %v458
    %vm469 = vcmask 523264
    %470 = vst.msk [vmem:[%s6 + $0x38] sm:$0xff] %vm469, %v455
    %471 = vset.pattern.permute.xlu0 1
    %472 = vperm.xlu0 %471, %v110
    %v473 = vpop.permute.xlu0 %472
    %v475 = vmul.f32 %v473, %v397
    %v476 = vmul.f32 %v473, %v399
    %v477 = vmul.f32 %v473, %v438
    %v478 = vmul.f32 %v473, %v440
    %v479 = vadd.f32 %v280, %v475
    %v480 = vadd.f32 %v281, %v476
    %v481 = vadd.f32 %v282, %v477
    %v482 = vadd.f32 %v283, %v478
    %s483 = scalar_lea.vmem %s3, 128
    %v484 = vld [vmem:[%s483] sm:$0xff]
    %v485 = vld [vmem:[%s483 + $0x8] sm:$0xff]
    %v486 = vld [vmem:[%s483 + $0x10] sm:$0xff]
    %v487 = vld [vmem:[%s483 + $0x18] sm:$0xff]
    %v488 = vld [vmem:[%s483 + $0x20] sm:$0xff]
    %v489 = vld [vmem:[%s483 + $0x28] sm:$0xff]
    %v490 = vld [vmem:[%s483 + $0x30] sm:$0xff]
    %v491 = vld [vmem:[%s483 + $0x38] sm:$0xff]
    %s492 = scalar_lea.vmem [#allocation2], 8
    %v493 = vld [vmem:[%s492] sm:$0xf]
    %v495 = vlaneseq
    %v496 = vshrl.u32 %v495, 7
    %v497 = vsub.s32 0, %v496
    %v498 = vrot.slane %v493, %v497
    %v499 = vlaneseq
    %v500 = vshrl.u32 %v499, 7
    %v501 = vsub.s32 1, %v500
    %v502 = vrot.slane %v493, %v501
    %v503 = vlaneseq
    %v504 = vshrl.u32 %v503, 7
    %v505 = vsub.s32 2, %v504
    %v506 = vrot.slane %v493, %v505
    %v507 = vlaneseq
    %v508 = vshrl.u32 %v507, 7
    %v509 = vsub.s32 3, %v508
    %v510 = vrot.slane %v493, %v509
    %515 = vrot.lane.b32.xlu0 %v109, 64
    %v516 = vpop.permute.xlu0 %515
    %v525 = vunpack.c.l.b16 %v484
    %v526 = vunpack.c.h.b16 %v484
    %v527 = vunpack.c.l.b16 %v485
    %v528 = vunpack.c.h.b16 %v485
    %v529 = vunpack.c.l.b16 %v486
    %v530 = vunpack.c.h.b16 %v486
    %v531 = vunpack.c.l.b16 %v487
    %v532 = vunpack.c.h.b16 %v487
    %v533 = vunpack.c.l.b16 %v488
    %v534 = vunpack.c.h.b16 %v488
    %v535 = vunpack.c.l.b16 %v489
    %v536 = vunpack.c.h.b16 %v489
    %v537 = vunpack.c.l.b16 %v490
    %v538 = vunpack.c.h.b16 %v490
    %v539 = vunpack.c.l.b16 %v491
    %v540 = vunpack.c.h.b16 %v491
    %v541 = vpack.c.b16 %v529, %v525
    %v542 = vpack.c.b16 %v530, %v526
    %v543 = vpack.c.b16 %v531, %v527
    %v544 = vpack.c.b16 %v532, %v528
    %v545 = vpack.c.b16 %v537, %v533
    %v546 = vpack.c.b16 %v538, %v534
    %v547 = vpack.c.b16 %v539, %v535
    %v548 = vpack.c.b16 %v540, %v536
    %v558 = vsel %vm64, %v516, 0
    %560 = vmatprep.subr.bf16.mxu0 %v542
    %561 = vmatpush1.bf16.msra.mxu0 %v541
    %562 = vmatprep.subr.bf16.mxu0 %v546
    %563 = vmatpush1.bf16.msra.mxu0 %v545
    %564 = vmatprep.subr.bf16.mxu0 0
    %565 = vmatpush1.bf16.msra.mxu0 0
    %566 = vmatprep.subr.bf16.mxu0 0
    %567 = vmatpush1.bf16.msra.mxu0 0
    %568 = vmatprep.subr.bf16.mxu0 0
    %569 = vmatpush1.bf16.msra.mxu0 0
    %570 = vmatprep.subr.bf16.mxu0 0
    %571 = vmatpush1.bf16.msra.mxu0 0
    %572 = vmatprep.subr.bf16.mxu0 0
    %573 = vmatpush1.bf16.msra.mxu0 0
    %574 = vmatprep.subr.bf16.mxu0 0
    %575 = vmatpush1.bf16.msra.mxu0 0
    %576 = vmatprep.subr.bf16.mxu0 0
    %577 = vmatpush1.bf16.msra.mxu0 0
    %578 = vmatprep.subr.bf16.mxu0 0
    %579 = vmatpush1.bf16.msra.mxu0 0
    %580 = vmatprep.subr.bf16.mxu0 0
    %581 = vmatpush1.bf16.msra.mxu0 0
    %582 = vmatprep.subr.bf16.mxu0 0
    %583 = vmatpush1.bf16.msra.mxu0 0
    %584 = vmatprep.subr.bf16.mxu0 0
    %585 = vmatpush1.bf16.msra.mxu0 0
    %586 = vmatprep.subr.bf16.mxu0 0
    %587 = vmatpush1.bf16.msra.mxu0 0
    %588 = vmatprep.subr.bf16.mxu0 0
    %589 = vmatpush1.bf16.msra.mxu0 0
    %590 = vmatprep.subr.bf16.mxu0 0
    %591 = vmatpush1.bf16.msra.mxu0 0
    %592 = vmatprep.mubr.bf16.mxu0 0
    %593 = vmatmul.mubr.bf16.gmra.mrb[0].mxu0 %v558
    %v594 = vpop.f32.mrb[0].mxu0
    %v595 = vadd.f32 %v498, %v594
    %v596 = vpop.f32.mrb[0].mxu0
    %v597 = vadd.f32 %v502, %v596
    %v598 = vpop.f32.mrb[0].mxu0
    %v599 = vpop.f32.mrb[0].mxu0
    %600 = vdwg.mxu0
    %601 = vmatprep.subr.bf16.mxu0 %v544
    %602 = vmatpush1.bf16.msra.mxu0 %v543
    %603 = vmatprep.subr.bf16.mxu0 %v548
    %604 = vmatpush1.bf16.msra.mxu0 %v547
    %605 = vmatprep.subr.bf16.mxu0 0
    %606 = vmatpush1.bf16.msra.mxu0 0
    %607 = vmatprep.subr.bf16.mxu0 0
    %608 = vmatpush1.bf16.msra.mxu0 0
    %609 = vmatprep.subr.bf16.mxu0 0
    %610 = vmatpush1.bf16.msra.mxu0 0
    %611 = vmatprep.subr.bf16.mxu0 0
    %612 = vmatpush1.bf16.msra.mxu0 0
    %613 = vmatprep.subr.bf16.mxu0 0
    %614 = vmatpush1.bf16.msra.mxu0 0
    %615 = vmatprep.subr.bf16.mxu0 0
    %616 = vmatpush1.bf16.msra.mxu0 0
    %617 = vmatprep.subr.bf16.mxu0 0
    %618 = vmatpush1.bf16.msra.mxu0 0
    %619 = vmatprep.subr.bf16.mxu0 0
    %620 = vmatpush1.bf16.msra.mxu0 0
    %621 = vmatprep.subr.bf16.mxu0 0
    %622 = vmatpush1.bf16.msra.mxu0 0
    %623 = vmatprep.subr.bf16.mxu0 0
    %624 = vmatpush1.bf16.msra.mxu0 0
    %625 = vmatprep.subr.bf16.mxu0 0
    %626 = vmatpush1.bf16.msra.mxu0 0
    %627 = vmatprep.subr.bf16.mxu0 0
    %628 = vmatpush1.bf16.msra.mxu0 0
    %629 = vmatprep.subr.bf16.mxu0 0
    %630 = vmatpush1.bf16.msra.mxu0 0
    %631 = vmatprep.subr.bf16.mxu0 0
    %632 = vmatpush1.bf16.msra.mxu0 0
    %633 = vmatprep.mubr.bf16.mxu0 0
    %634 = vmatmul.mubr.bf16.gmra.mrb[0].mxu0 %v558
    %v635 = vpop.f32.mrb[0].mxu0
    %v636 = vadd.f32 %v506, %v635
    %v637 = vpop.f32.mrb[0].mxu0
    %v638 = vadd.f32 %v510, %v637
    %v639 = vpop.f32.mrb[0].mxu0
    %v640 = vpop.f32.mrb[0].mxu0
    %641 = vdwg.mxu0
    %646 = vrot.lane.b32.xlu0 %v595, 64
    %v647 = vpop.permute.xlu0 %646
    %648 = vrot.lane.b32.xlu0 %v597, 64
    %v649 = vpop.permute.xlu0 %648
    %650 = vrot.lane.b32.xlu0 %v636, 64
    %v651 = vpop.permute.xlu0 %650
    %652 = vrot.lane.b32.xlu0 %v638, 64
    %v653 = vpop.permute.xlu0 %652
    %v654 = vsel %vm469, %v647, %v649
    %v655 = vsel %vm469, %v649, %v651
    %v656 = vsel %vm469, %v651, %v653
    %vm662 = vcmask 1048064
    %663 = vst.msk [vmem:[%s6 + $0x38] sm:$0xff] %vm662, %v647
    %664 = vst [vmem:[%s6 + $0x40] sm:$0xff] %v654
    %665 = vst [vmem:[%s6 + $0x48] sm:$0xff] %v655
    %666 = vst [vmem:[%s6 + $0x50] sm:$0xff] %v656
    %667 = vst.msk [vmem:[%s6 + $0x58] sm:$0xff] %vm64, %v653
    %668 = vset.pattern.permute.xlu0 2
    %669 = vperm.xlu0 %668, %v110
    %v670 = vpop.permute.xlu0 %669
    %v672 = vmul.f32 %v670, %v595
    %v673 = vmul.f32 %v670, %v597
    %v674 = vmul.f32 %v670, %v636
    %v675 = vmul.f32 %v670, %v638
    %v676 = vadd.f32 %v479, %v672
    %v677 = vadd.f32 %v480, %v673
    %v678 = vadd.f32 %v481, %v674
    %v679 = vadd.f32 %v482, %v675
    %s680 = scalar_lea.vmem %s3, 192
    %v681 = vld [vmem:[%s680] sm:$0xff]
    %v682 = vld [vmem:[%s680 + $0x8] sm:$0xff]
    %v683 = vld [vmem:[%s680 + $0x10] sm:$0xff]
    %v684 = vld [vmem:[%s680 + $0x18] sm:$0xff]
    %v685 = vld [vmem:[%s680 + $0x20] sm:$0xff]
    %v686 = vld [vmem:[%s680 + $0x28] sm:$0xff]
    %v687 = vld [vmem:[%s680 + $0x30] sm:$0xff]
    %v688 = vld [vmem:[%s680 + $0x38] sm:$0xff]
    %s689 = scalar_lea.vmem [#allocation2], 12
    %v690 = vld [vmem:[%s689] sm:$0xf]
    %v692 = vlaneseq
    %v693 = vshrl.u32 %v692, 7
    %v694 = vsub.s32 0, %v693
    %v695 = vrot.slane %v690, %v694
    %v696 = vlaneseq
    %v697 = vshrl.u32 %v696, 7
    %v698 = vsub.s32 1, %v697
    %v699 = vrot.slane %v690, %v698
    %v700 = vlaneseq
    %v701 = vshrl.u32 %v700, 7
    %v702 = vsub.s32 2, %v701
    %v703 = vrot.slane %v690, %v702
    %v704 = vlaneseq
    %v705 = vshrl.u32 %v704, 7
    %v706 = vsub.s32 3, %v705
    %v707 = vrot.slane %v690, %v706
    %712 = vrot.lane.b32.xlu0 %v109, 32
    %v713 = vpop.permute.xlu0 %712
    %v722 = vunpack.c.l.b16 %v681
    %v723 = vunpack.c.h.b16 %v681
    %v724 = vunpack.c.l.b16 %v682
    %v725 = vunpack.c.h.b16 %v682
    %v726 = vunpack.c.l.b16 %v683
    %v727 = vunpack.c.h.b16 %v683
    %v728 = vunpack.c.l.b16 %v684
    %v729 = vunpack.c.h.b16 %v684
    %v730 = vunpack.c.l.b16 %v685
    %v731 = vunpack.c.h.b16 %v685
    %v732 = vunpack.c.l.b16 %v686
    %v733 = vunpack.c.h.b16 %v686
    %v734 = vunpack.c.l.b16 %v687
    %v735 = vunpack.c.h.b16 %v687
    %v736 = vunpack.c.l.b16 %v688
    %v737 = vunpack.c.h.b16 %v688
    %v738 = vpack.c.b16 %v726, %v722
    %v739 = vpack.c.b16 %v727, %v723
    %v740 = vpack.c.b16 %v728, %v724
    %v741 = vpack.c.b16 %v729, %v725
    %v742 = vpack.c.b16 %v734, %v730
    %v743 = vpack.c.b16 %v735, %v731
    %v744 = vpack.c.b16 %v736, %v732
    %v745 = vpack.c.b16 %v737, %v733
    %v755 = vsel %vm64, %v713, 0
    %757 = vmatprep.subr.bf16.mxu0 %v739
    %758 = vmatpush1.bf16.msra.mxu0 %v738
    %759 = vmatprep.subr.bf16.mxu0 %v743
    %760 = vmatpush1.bf16.msra.mxu0 %v742
    %761 = vmatprep.subr.bf16.mxu0 0
    %762 = vmatpush1.bf16.msra.mxu0 0
    %763 = vmatprep.subr.bf16.mxu0 0
    %764 = vmatpush1.bf16.msra.mxu0 0
    %765 = vmatprep.subr.bf16.mxu0 0
    %766 = vmatpush1.bf16.msra.mxu0 0
    %767 = vmatprep.subr.bf16.mxu0 0
    %768 = vmatpush1.bf16.msra.mxu0 0
    %769 = vmatprep.subr.bf16.mxu0 0
    %770 = vmatpush1.bf16.msra.mxu0 0
    %771 = vmatprep.subr.bf16.mxu0 0
    %772 = vmatpush1.bf16.msra.mxu0 0
    %773 = vmatprep.subr.bf16.mxu0 0
    %774 = vmatpush1.bf16.msra.mxu0 0
    %775 = vmatprep.subr.bf16.mxu0 0
    %776 = vmatpush1.bf16.msra.mxu0 0
    %777 = vmatprep.subr.bf16.mxu0 0
    %778 = vmatpush1.bf16.msra.mxu0 0
    %779 = vmatprep.subr.bf16.mxu0 0
    %780 = vmatpush1.bf16.msra.mxu0 0
    %781 = vmatprep.subr.bf16.mxu0 0
    %782 = vmatpush1.bf16.msra.mxu0 0
    %783 = vmatprep.subr.bf16.mxu0 0
    %784 = vmatpush1.bf16.msra.mxu0 0
    %785 = vmatprep.subr.bf16.mxu0 0
    %786 = vmatpush1.bf16.msra.mxu0 0
    %787 = vmatprep.subr.bf16.mxu0 0
    %788 = vmatpush1.bf16.msra.mxu0 0
    %789 = vmatprep.mubr.bf16.mxu0 0
    %790 = vmatmul.mubr.bf16.gmra.mrb[0].mxu0 %v755
    %v791 = vpop.f32.mrb[0].mxu0
    %v792 = vadd.f32 %v695, %v791
    %v793 = vpop.f32.mrb[0].mxu0
    %v794 = vadd.f32 %v699, %v793
    %v795 = vpop.f32.mrb[0].mxu0
    %v796 = vpop.f32.mrb[0].mxu0
    %797 = vdwg.mxu0
    %798 = vmatprep.subr.bf16.mxu0 %v741
    %799 = vmatpush1.bf16.msra.mxu0 %v740
    %800 = vmatprep.subr.bf16.mxu0 %v745
    %801 = vmatpush1.bf16.msra.mxu0 %v744
    %802 = vmatprep.subr.bf16.mxu0 0
    %803 = vmatpush1.bf16.msra.mxu0 0
    %804 = vmatprep.subr.bf16.mxu0 0
    %805 = vmatpush1.bf16.msra.mxu0 0
    %806 = vmatprep.subr.bf16.mxu0 0
    %807 = vmatpush1.bf16.msra.mxu0 0
    %808 = vmatprep.subr.bf16.mxu0 0
    %809 = vmatpush1.bf16.msra.mxu0 0
    %810 = vmatprep.subr.bf16.mxu0 0
    %811 = vmatpush1.bf16.msra.mxu0 0
    %812 = vmatprep.subr.bf16.mxu0 0
    %813 = vmatpush1.bf16.msra.mxu0 0
    %814 = vmatprep.subr.bf16.mxu0 0
    %815 = vmatpush1.bf16.msra.mxu0 0
    %816 = vmatprep.subr.bf16.mxu0 0
    %817 = vmatpush1.bf16.msra.mxu0 0
    %818 = vmatprep.subr.bf16.mxu0 0
    %819 = vmatpush1.bf16.msra.mxu0 0
    %820 = vmatprep.subr.bf16.mxu0 0
    %821 = vmatpush1.bf16.msra.mxu0 0
    %822 = vmatprep.subr.bf16.mxu0 0
    %823 = vmatpush1.bf16.msra.mxu0 0
    %824 = vmatprep.subr.bf16.mxu0 0
    %825 = vmatpush1.bf16.msra.mxu0 0
    %826 = vmatprep.subr.bf16.mxu0 0
    %827 = vmatpush1.bf16.msra.mxu0 0
    %828 = vmatprep.subr.bf16.mxu0 0
    %829 = vmatpush1.bf16.msra.mxu0 0
    %830 = vmatprep.mubr.bf16.mxu0 0
    %831 = vmatmul.mubr.bf16.gmra.mrb[0].mxu0 %v755
    %v832 = vpop.f32.mrb[0].mxu0
    %v833 = vadd.f32 %v703, %v832
    %v834 = vpop.f32.mrb[0].mxu0
    %v835 = vadd.f32 %v707, %v834
    %v836 = vpop.f32.mrb[0].mxu0
    %v837 = vpop.f32.mrb[0].mxu0
    %838 = vdwg.mxu0
    %843 = vrot.lane.b32.xlu0 %v792, 32
    %v844 = vpop.permute.xlu0 %843
    %845 = vrot.lane.b32.xlu0 %v794, 32
    %v846 = vpop.permute.xlu0 %845
    %847 = vrot.lane.b32.xlu0 %v833, 32
    %v848 = vpop.permute.xlu0 %847
    %849 = vrot.lane.b32.xlu0 %v835, 32
    %v850 = vpop.permute.xlu0 %849
    %v851 = vsel %vm64, %v844, %v846
    %v852 = vsel %vm64, %v846, %v848
    %v853 = vsel %vm64, %v848, %v850
    %vm858 = vcmask 1047808
    %859 = vst.msk [vmem:[%s6 + $0x58] sm:$0xff] %vm858, %v844
    %860 = vst [vmem:[%s6 + $0x60] sm:$0xff] %v851
    %861 = vst [vmem:[%s6 + $0x68] sm:$0xff] %v852
    %862 = vst [vmem:[%s6 + $0x70] sm:$0xff] %v853
    %863 = vset.pattern.permute.xlu0 3
    %864 = vperm.xlu0 %863, %v110
    %v865 = vpop.permute.xlu0 %864
    %v867 = vmul.f32 %v865, %v792
    %v868 = vmul.f32 %v865, %v794
    %v869 = vmul.f32 %v865, %v833
    %v870 = vmul.f32 %v865, %v835
    %v871 = vadd.f32 %v676, %v867
    %v872 = vadd.f32 %v677, %v868
    %v873 = vadd.f32 %v678, %v869
    %v874 = vadd.f32 %v679, %v870
    %875 = vst [vmem:[%s7] sm:$0xff] %v871
    %876 = vst [vmem:[%s7 + $0x8] sm:$0xff] %v872
    %877 = vst [vmem:[%s7 + $0x10] sm:$0xff] %v873
    %878 = vst.msk [vmem:[%s7 + $0x18] sm:$0xff] %vm269, %v874
    // Predicated region
    $region30: #{moe_forward.1} parent=1 // pred_check
      _
    $region31: #{moe_forward.1} parent=1 // pred_check_branch
      %880 = sbr.rel (0) target = $region33
    $region32: #{moe_forward.1} parent=1 // pred_region
      _
    $region33: #{moe_forward.1} parent=1 // pred_fallthru
      _
    // Predicated region
    $region34: #{moe_forward.1} parent=1 // pred_check
      _
    $region35: #{moe_forward.1} parent=1 // pred_check_branch
      %882 = sbr.rel (0) target = $region37
    $region36: #{moe_forward.1} parent=1 // pred_region
      _
    $region37: #{moe_forward.1} parent=1 // pred_fallthru
      _
    // Predicated region
    $region38: #{moe_forward.1} parent=1 // pred_check
      _
    $region39: #{moe_forward.1} parent=1 // pred_check_branch
      %884 = sbr.rel (0) target = $region41
    $region40: #{moe_forward.1} parent=1 // pred_region
      _
    $region41: #{moe_forward.1} parent=1 // pred_fallthru
      _
    // Predicated region
    $region42: #{moe_forward.1} parent=1 // pred_check
      _
    $region43: #{moe_forward.1} parent=1 // pred_check_branch
      %886 = sbr.rel (0) target = $region45
    $region44: #{moe_forward.1} parent=1 // pred_region
      _
    $region45: #{moe_forward.1} parent=1 // pred_fallthru
      _
    %887 = vsyncpa [#allocation3], 1

</llo_original>
